<compile_context>
chip_gen: v5e
topology: v5e:2x2
jax: 0.10.0
libtpu: 0.0.40
codegen_flags: <defaults>
</compile_context>

<pallas_src>
import jax
import jax.numpy as jnp
from jax.experimental import pallas as pl
from jax.experimental.pallas import tpu as pltpu


def _hbm_copy_kernel(x_ref, o_ref, sem):
    # Direct HBM->HBM DMA: no VMEM staging, no vld/vst slots consumed.
    cp = pltpu.make_async_copy(x_ref, o_ref, sem)
    cp.start()
    cp.wait()


def _pallas_identity_copy(x):
    """Materialize a fresh copy of `x` via a single HBM->HBM DMA."""
    return pl.pallas_call(
        _hbm_copy_kernel,
        out_shape=jax.ShapeDtypeStruct(x.shape, x.dtype),
        in_specs=[pl.BlockSpec(memory_space=pl.ANY)],
        out_specs=pl.BlockSpec(memory_space=pl.ANY),
        scratch_shapes=[pltpu.SemaphoreType.DMA(())],
    )(x)


def dummy_block_forward(x, residual, dim=None, materialize=False):
    """Pallas equivalent of dummyBlock.forward(x, residual) -> (x, x).

    `residual` and `dim` are accepted for signature parity but unused,
    matching the PyTorch module.

    By default no kernel is launched (the block is an identity, so the
    fastest implementation is no data movement at all). Pass
    materialize=True to force a fresh output buffer via a direct HBM->HBM
    DMA copy kernel (e.g. for donation / aliasing reasons downstream).
    Note the two returned values still alias each other, mirroring PyTorch's
    `return (x, x)`; if a caller needs two independently donatable buffers,
    prefer absorbing that requirement into the consuming kernel via
    input_output_aliases rather than paying for extra copies here.
    """
    del residual, dim  # unused, matching the PyTorch module

    if not materialize:
        # Exactly mirrors PyTorch: the same tensor is returned twice.
        return (x, x)

    out = _pallas_identity_copy(x)
    return (out, out)


if __name__ == "__main__":
    # Small shapes consistent with a sequence-model block: (B, L, D)
    B, L, D = 2, 8, 32
    key = jax.random.PRNGKey(0)
    kx, kr = jax.random.split(key)
    x = jax.random.normal(kx, (B, L, D), dtype=jnp.float32)
    residual = jax.random.normal(kr, (B, L, D), dtype=jnp.float32)

    # Zero-cost primary path (no kernel launched).
    y0, y1 = dummy_block_forward(x, residual, dim=D)
    jax.block_until_ready(y0)
    assert y0.shape == x.shape and y1.shape == x.shape
    assert jnp.allclose(y0, x) and jnp.allclose(y1, x)

    # Materialized path: exercises the HBM->HBM DMA copy kernel once.
    z0, z1 = dummy_block_forward(x, residual, dim=D, materialize=True)
    jax.block_until_ready(z0)
    jax.block_until_ready(z1)
    assert z0.shape == x.shape and z1.shape == x.shape
    assert jnp.allclose(z0, x) and jnp.allclose(z1, x)

    # Also exercise a shape whose element count is NOT a multiple of 128 to
    # confirm the DMA path is layout/shape agnostic (no padding needed).
    w = jax.random.normal(kr, (3, 5, 7), dtype=jnp.bfloat16)
    w0, _ = dummy_block_forward(w, w, materialize=True)
    jax.block_until_ready(w0)
    assert w0.shape == w.shape
    assert jnp.array_equal(w0, w)

    print("KERNEL_OK")
</pallas_src>

<mosaic_0001>
module attributes {stable_mosaic.version = 11 : i64} {
  func.func @_hbm_copy_kernel(%arg0: memref<2x8x32xf32, #tpu.memory_space<any>>, %arg1: memref<2x8x32xf32, #tpu.memory_space<any>>, %arg2: memref<!tpu.dma_semaphore, #tpu.memory_space<semaphore_mem>>) attributes {dimension_semantics = [], scalar_prefetch = 0 : i64, scratch_operands = 1 : i64, tpu.core_type = #tpu.core_type<tc>} {
    tpu.enqueue_dma source(%arg0 : memref<2x8x32xf32, #tpu.memory_space<any>>) target(%arg1 : memref<2x8x32xf32, #tpu.memory_space<any>>) target_semaphore(%arg2 : memref<!tpu.dma_semaphore, #tpu.memory_space<semaphore_mem>>)
    tpu.wait_dma2 semaphore(%arg2 : memref<!tpu.dma_semaphore, #tpu.memory_space<semaphore_mem>>) src(%arg0 : memref<2x8x32xf32, #tpu.memory_space<any>>) dst(%arg1 : memref<2x8x32xf32, #tpu.memory_space<any>>)
    return
  }
}

</mosaic_0001>

<llo_original>
// kernel: tpu_custom_call.1
$region0: #{tpu_custom_call.1}
  #allocation0 [shape = 'u32[]', space=smem, size = 0x4, offset = 0x4, fixed_abs, tag = 'smem constant byte address 0x4 - core index']
  #allocation1 [shape = 'u32[72,128]{1,0:T(1,128)}', space=vmem, size = 0x9000, scoped, tag = 'internal scratch']
  #allocation2 [shape = 's32[1]{0}', space=sflag, size = 0x4, scoped, tag = 'scratch operand']
  #allocation3 [shape = 's32[]', space=sflag, size = 0x4, offset = 0, fixed_abs, tag = 'sflag constant byte address 0x0 - dummy sync flag']
  #allocation4 [shape = 'u32[0]{0}', space=smem, size = 0, offset = 0, fixed_abs, tag = 'smem constant byte address 0x0 - null']
  %s0 = inlined_call_operand.hbm [shape: f32[2,8,32], index: 0, kind: input, shape index: {}]
  %s1 = inlined_call_operand.hbm [shape: f32[2,8,32], index: 1, kind: output, shape index: {}]
  %s2 = sld [smem:[#allocation0]]
  $region2: #{tpu_custom_call.1} parent=0
    _
  %s4 = ssub.s32 1, %s2
  %s5 = scalar_select 0, %s4, %s2
  %s7 = sshll.u32 1, 14
  %s8 = sxor.u32 4294967295, %s7
  %s10 = sshll.u32 %s0, 4
  %s11 = int_to_ptr.hbm [resolvable:$true] %s10
  %s12 = sshll.u32 %s1, 4
  %s13 = int_to_ptr.hbm [resolvable:$true] %s12
  %16 = dma.general %s11, 256, %s13, [#allocation2], [#allocation3], [#allocation4], 0, 0
  %s17 = smul.u32 2, 8
  %s18 = smul.u32 %s17, 1
  %s19 = sshll.u32 %s18, 4
  %20 = dma.done [#allocation2], %s19
  %21 = vsyncmov [#allocation2]
  %s22 = vpop.sfrf %21
  %p23 = scmp.eq.s32.totalorder %s22, 0
  %p24 = pneg %p23
  %26 = shalt.err (%p24)

</llo_original>
